<compile_context>
chip_gen: v7x
topology: tpu7x:2x2x1
jax: 0.10.0
libtpu: 0.0.40
codegen_flags: <defaults>
</compile_context>

<pallas_src>
import functools
import math

import jax
import jax.numpy as jnp
from jax.experimental import pallas as pl
from jax.experimental.pallas import tpu as pltpu


def _round_up(x, m):
    return (x + m - 1) // m * m


_GELU_C = math.sqrt(2.0 / math.pi)
_GELU_A = 0.044715 * _GELU_C


def _gelu_tanh(h):
    # tanh-approximate GELU (torch.nn.GELU(approximate='tanh')), rearranged to
    # save VPU passes:
    #   0.5*h*(1 + tanh(c*(h + 0.044715*h^3))) == (0.5*h)*(1 + tanh(h*(c + a*h*h)))
    # with a = 0.044715*c.  Python-float constants are weakly typed, so the
    # math stays in h's dtype (bf16 on v6e/v7x, f32 elsewhere).
    t = h * (_GELU_C + _GELU_A * (h * h))
    return (0.5 * h) * (1.0 + jnp.tanh(t))


def _mlp_resident_kernel(x_ref, w1_ref, b1_ref, w2_ref, b2_ref, o_ref, *,
                         pointwise_dtype):
    # x_ref: (tm, C), w1_ref: (C, H), b1_ref: (1, H), w2_ref: (H, C), b2_ref: (1, C)
    h = jnp.dot(x_ref[...], w1_ref[...], preferred_element_type=jnp.float32)
    h = h + b1_ref[...].astype(jnp.float32)
    g = _gelu_tanh(h.astype(pointwise_dtype))
    out = jnp.dot(g.astype(w2_ref.dtype), w2_ref[...],
                  preferred_element_type=jnp.float32)
    out = out + b2_ref[...].astype(jnp.float32)
    o_ref[...] = out.astype(o_ref.dtype)


def _mlp_hstream_kernel(x_ref, w1_ref, b1_ref, w2_ref, b2_ref, o_ref, acc_ref, *,
                        pointwise_dtype):
    # Hidden-dim streaming: grid=(M//tm, H//th).  Only a (C, th) slice of W1 and
    # a (th, C) slice of W2 are resident per step; GELU temporaries are bounded
    # to (tm, th); partial projections accumulate into f32 VMEM scratch.
    k = pl.program_id(1)

    @pl.when(k == 0)
    def _():
        acc_ref[...] = jnp.zeros_like(acc_ref)

    h = jnp.dot(x_ref[...], w1_ref[...], preferred_element_type=jnp.float32)
    h = h + b1_ref[...].astype(jnp.float32)
    g = _gelu_tanh(h.astype(pointwise_dtype))
    acc_ref[...] += jnp.dot(g.astype(w2_ref.dtype), w2_ref[...],
                            preferred_element_type=jnp.float32)

    @pl.when(k == pl.num_programs(1) - 1)
    def _():
        o_ref[...] = (acc_ref[...] + b2_ref[...].astype(jnp.float32)).astype(o_ref.dtype)


def _resident_spec(block_shape, index_map):
    """Operand kept resident in VMEM (constant index_map); single-buffered when
    the installed JAX supports pipeline_mode (halves resident-weight VMEM)."""
    try:
        return pl.BlockSpec(block_shape, index_map,
                            pipeline_mode=pl.Buffered(buffer_count=1))
    except (TypeError, AttributeError):
        return pl.BlockSpec(block_shape, index_map)


def _weight_buffer_count():
    # Detect whether single-buffering actually takes effect, so the VMEM budget
    # accounts for a silent fall-back to double buffering.
    try:
        pl.BlockSpec((8, 128), lambda i: (0, 0),
                     pipeline_mode=pl.Buffered(buffer_count=1))
        return 1
    except (TypeError, AttributeError):
        return 2


def _device_kind():
    try:
        return jax.devices()[0].device_kind.lower()
    except Exception:
        return ""


def _vmem_capacity_bytes():
    try:
        return int(pltpu.get_tpu_info().vmem_capacity_bytes)
    except Exception:
        pass
    kind = _device_kind()
    if "v7" in kind or "7x" in kind:
        return 64 << 20       # v7x: 64 MiB per TensorCore
    return 128 << 20          # v5e / v6e


def _pointwise_dtype(op_dtype):
    """GELU compute dtype: bf16 on v6e/v7x (bf16-capable VPU/EUP) when matmul
    operands are bf16; f32 otherwise (v5e has no bf16 VPU/EUP)."""
    if jnp.dtype(op_dtype) != jnp.dtype(jnp.bfloat16):
        return jnp.float32
    kind = _device_kind()
    if "v6" in kind or "v7" in kind or "7x" in kind:
        return jnp.bfloat16
    return jnp.float32


def mlp_pallas(x, w1, b1, w2, b2, *, tm=512, th=None, stream_hidden=None,
               compute_dtype=None, vmem_limit_bytes=None):
    """x: (B, T, C), w1: (C, 4C), b1: (4C,), w2: (4C, C), b2: (C,) -> (B, T, C).

    compute_dtype: optionally cast x / W1 / W2 (e.g. to jnp.bfloat16) before the
    matmuls -- bf16 operands are the single biggest MXU-rate lever on all TPU
    generations; accumulation stays f32 either way.
    """
    if compute_dtype is not None:
        x = x.astype(compute_dtype)
        w1 = w1.astype(compute_dtype)
        w2 = w2.astype(compute_dtype)

    B, T, C = x.shape
    H = w1.shape[1]  # 4 * C
    M = B * T

    itm = jnp.dtype(x.dtype).itemsize
    wtm = jnp.dtype(w1.dtype).itemsize
    pointwise_dtype = _pointwise_dtype(w1.dtype)
    weight_bufs = _weight_buffer_count()
    # Never ask for more scoped VMEM than physically exists (v7x: 64 MiB/TC).
    vmem_cap = min(100 << 20, _vmem_capacity_bytes() - (8 << 20))

    # Row tile: large enough to fill the MXU, clamped for tiny inputs.
    tm = max(8, min(tm, _round_up(M, 8)))
    # Megacore: keep >= 2 steps on the parallel row axis so both TensorCores
    # (v7x) get work even for small M.
    if M > 8 and _round_up(M, tm) // tm < 2:
        tm = max(8, _round_up((M + 1) // 2, 8))

    def resident_bytes(tm_):
        return ((C * H + H * C + H + C) * wtm * weight_bufs   # resident weights + biases
                + 2 * tm_ * C * 2 * itm                       # double-buffered x / out tiles
                + 5 * tm_ * H * 4                             # f32 hidden + GELU temporaries
                + tm_ * H * wtm)                              # cast feeding the 2nd matmul

    def stream_bytes(tm_, th_):
        return (2 * (C * th_ + th_ * C + th_) * wtm           # double-buffered W1/W2/b1 slices
                + C * wtm * weight_bufs                       # resident b2
                + 2 * tm_ * C * 2 * itm                       # double-buffered x / out tiles
                + tm_ * C * 4                                 # f32 accumulator scratch
                + 5 * tm_ * th_ * 4                           # f32 hidden + GELU temporaries
                + tm_ * th_ * wtm)                            # cast feeding the 2nd matmul

    if stream_hidden is None:
        stream_hidden = (
            (C * H + H * C) * wtm * weight_bufs > min(32 << 20, vmem_cap // 2)
            or resident_bytes(tm) > int(0.85 * vmem_cap))

    if stream_hidden:
        if th is None:
            th = next((c for c in (2048, 1024, 512, 256, 128) if H % c == 0), H)
        while (stream_bytes(tm, th) > int(0.85 * vmem_cap)
               and th > 256 and H % (th // 2) == 0):
            th //= 2
        while stream_bytes(tm, th) > int(0.85 * vmem_cap) and tm > 128:
            tm = max(128, _round_up(tm // 2, 8))
        est = stream_bytes(tm, th)
    else:
        while resident_bytes(tm) > int(0.85 * vmem_cap) and tm > 128:
            tm = max(128, _round_up(tm // 2, 8))
        est = resident_bytes(tm)

    M_pad = _round_up(M, tm)
    x2 = x.reshape(M, C)
    if M_pad != M:
        x2 = jnp.pad(x2, ((0, M_pad - M), (0, 0)))
    b1_2 = b1.reshape(1, H)
    b2_2 = b2.reshape(1, C)

    if vmem_limit_bytes is None:
        vmem_limit_bytes = min(max(int(est * 1.25), 32 << 20), vmem_cap)

    cost = pl.CostEstimate(
        flops=4 * M_pad * C * H,                              # two matmuls
        transcendentals=M_pad * H,                            # tanh per hidden element
        bytes_accessed=(2 * M_pad * C) * itm + (C * H + H * C + H + C) * wtm,
    )

    if stream_hidden:
        kernel = functools.partial(_mlp_hstream_kernel, pointwise_dtype=pointwise_dtype)
        grid_spec = pltpu.PrefetchScalarGridSpec(
            num_scalar_prefetch=0,
            grid=(M_pad // tm, H // th),
            in_specs=[
                pl.BlockSpec((tm, C), lambda i, k: (i, 0)),       # x row tile
                pl.BlockSpec((C, th), lambda i, k: (0, k)),       # W1 column block (streamed)
                pl.BlockSpec((1, th), lambda i, k: (0, k)),       # b1 chunk
                pl.BlockSpec((th, C), lambda i, k: (k, 0)),       # W2 row block (streamed)
                _resident_spec((1, C), lambda i, k: (0, 0)),      # b2 (resident)
            ],
            out_specs=pl.BlockSpec((tm, C), lambda i, k: (i, 0)),
            scratch_shapes=[pltpu.VMEM((tm, C), jnp.float32)],    # f32 accumulator
        )
        dim_sem = ("parallel", "arbitrary")
    else:
        kernel = functools.partial(_mlp_resident_kernel, pointwise_dtype=pointwise_dtype)
        grid_spec = pltpu.PrefetchScalarGridSpec(
            num_scalar_prefetch=0,
            grid=(M_pad // tm,),
            in_specs=[
                pl.BlockSpec((tm, C), lambda i: (i, 0)),          # x row tile (streamed)
                _resident_spec((C, H), lambda i: (0, 0)),         # W1 (resident)
                _resident_spec((1, H), lambda i: (0, 0)),         # b1
                _resident_spec((H, C), lambda i: (0, 0)),         # W2 (resident)
                _resident_spec((1, C), lambda i: (0, 0)),         # b2
            ],
            out_specs=pl.BlockSpec((tm, C), lambda i: (i, 0)),
        )
        dim_sem = ("parallel",)

    out2 = pl.pallas_call(
        kernel,
        out_shape=jax.ShapeDtypeStruct((M_pad, C), x.dtype),
        grid_spec=grid_spec,
        compiler_params=pltpu.CompilerParams(
            dimension_semantics=dim_sem,
            vmem_limit_bytes=int(vmem_limit_bytes),
        ),
        cost_estimate=cost,
    )(x2, w1, b1_2, w2, b2_2)

    if M_pad != M:
        out2 = out2[:M]
    return out2.reshape(B, T, C)


def mlp_reference(x, w1, b1, w2, b2):
    h = jnp.einsum("btc,ch->bth", x, w1) + b1
    g = 0.5 * h * (1.0 + jnp.tanh(math.sqrt(2.0 / math.pi) * (h + 0.044715 * h ** 3)))
    return jnp.einsum("bth,hc->btc", g, w2) + b2


if __name__ == "__main__":
    # Small config consistent with the module: n_embd=32 -> intermediate 4*32=128
    B, T, C = 2, 8, 32
    H = 4 * C

    key = jax.random.PRNGKey(0)
    kx, k1, k2, k3, k4 = jax.random.split(key, 5)

    x = jax.random.normal(kx, (B, T, C), dtype=jnp.float32)

    # Deterministic init mimicking nn.Linear's uniform(-1/sqrt(fan_in), 1/sqrt(fan_in))
    lim1 = 1.0 / math.sqrt(C)
    lim2 = 1.0 / math.sqrt(H)
    w1 = jax.random.uniform(k1, (C, H), minval=-lim1, maxval=lim1, dtype=jnp.float32)
    b1 = jax.random.uniform(k2, (H,), minval=-lim1, maxval=lim1, dtype=jnp.float32)
    w2 = jax.random.uniform(k3, (H, C), minval=-lim2, maxval=lim2, dtype=jnp.float32)
    b2 = jax.random.uniform(k4, (C,), minval=-lim2, maxval=lim2, dtype=jnp.float32)

    ref = mlp_reference(x, w1, b1, w2, b2)

    # 1) f32 path, weights resident in VMEM (default plan).
    out = jax.block_until_ready(mlp_pallas(x, w1, b1, w2, b2))
    assert out.shape == (B, T, C)
    assert jnp.allclose(out, ref, atol=1e-5, rtol=1e-5), "mismatch (resident f32)"

    # 2) Hidden-dim-streaming plan (auto-selected for large n_embd; forced here).
    out_s = jax.block_until_ready(mlp_pallas(x, w1, b1, w2, b2, stream_hidden=True))
    assert jnp.allclose(out_s, ref, atol=1e-5, rtol=1e-5), "mismatch (H-streaming)"

    # 3) Padded (non-divisible row count) path: M = 2*7 = 14 rows.
    x_odd = jax.random.normal(kx, (B, 7, C), dtype=jnp.float32)
    out_odd = jax.block_until_ready(mlp_pallas(x_odd, w1, b1, w2, b2))
    ref_odd = mlp_reference(x_odd, w1, b1, w2, b2)
    assert out_odd.shape == (B, 7, C)
    assert jnp.allclose(out_odd, ref_odd, atol=1e-5, rtol=1e-5), "mismatch (padded path)"

    # 4) bf16 MXU-operand path (the fast configuration on real models); compared
    #    against an f32 reference computed from the bf16-rounded inputs.
    out_bf = mlp_pallas(x, w1, b1, w2, b2, compute_dtype=jnp.bfloat16)
    out_bf = jax.block_until_ready(out_bf).astype(jnp.float32)
    ref_bf = mlp_reference(
        x.astype(jnp.bfloat16).astype(jnp.float32),
        w1.astype(jnp.bfloat16).astype(jnp.float32), b1,
        w2.astype(jnp.bfloat16).astype(jnp.float32), b2)
    assert jnp.allclose(out_bf, ref_bf, atol=3e-2, rtol=3e-2), "mismatch (bf16 path)"

    print("KERNEL_OK")
</pallas_src>

<mosaic_0001>
module attributes {stable_mosaic.version = 11 : i64} {
  func.func @_mlp_resident_kernel(%arg0: i32, %arg1: memref<8x32xf32, #tpu.memory_space<vmem>>, %arg2: memref<32x128xf32, #tpu.memory_space<vmem>>, %arg3: memref<1x128xf32, #tpu.memory_space<vmem>>, %arg4: memref<128x32xf32, #tpu.memory_space<vmem>>, %arg5: memref<1x32xf32, #tpu.memory_space<vmem>>, %arg6: memref<8x32xf32, #tpu.memory_space<vmem>>) attributes {dimension_semantics = [#tpu.dimension_semantics<parallel>], iteration_bounds = array<i64: 2>, scalar_prefetch = 0 : i64, scratch_operands = 0 : i64, tpu.core_type = #tpu.core_type<tc>, window_params = [{transform_indices = @transform_0, window_bounds = array<i64: 8, 32>}, {pipeline_mode = #tpu.pipeline_mode<synchronous>, transform_indices = @transform_1, window_bounds = array<i64: 32, 128>}, {pipeline_mode = #tpu.pipeline_mode<synchronous>, transform_indices = @transform_2, window_bounds = array<i64: 1, 128>}, {pipeline_mode = #tpu.pipeline_mode<synchronous>, transform_indices = @transform_3, window_bounds = array<i64: 128, 32>}, {pipeline_mode = #tpu.pipeline_mode<synchronous>, transform_indices = @transform_4, window_bounds = array<i64: 1, 32>}, {transform_indices = @transform_5, window_bounds = array<i64: 8, 32>}]} {
    %c0 = arith.constant 0 : index
    %c0_0 = arith.constant 0 : index
    %0 = vector.load %arg1[%c0, %c0_0] : memref<8x32xf32, #tpu.memory_space<vmem>>, vector<8x32xf32>
    %c0_1 = arith.constant 0 : index
    %c0_2 = arith.constant 0 : index
    %1 = vector.load %arg2[%c0_1, %c0_2] : memref<32x128xf32, #tpu.memory_space<vmem>>, vector<32x128xf32>
    %cst = arith.constant dense<0.000000e+00> : vector<8x128xf32>
    %2 = tpu.matmul %0, %1, %cst {dimension_numbers = #tpu.dot_dimension_numbers<[1], [0], [0], [1], [0, 0, 1, 1], [], []>} : vector<8x32xf32>, vector<32x128xf32>, vector<8x128xf32> -> vector<8x128xf32>
    %c0_3 = arith.constant 0 : index
    %c0_4 = arith.constant 0 : index
    %3 = vector.load %arg3[%c0_3, %c0_4] : memref<1x128xf32, #tpu.memory_space<vmem>>, vector<1x128xf32>
    %4 = vector.broadcast %3 : vector<1x128xf32> to vector<8x128xf32>
    %5 = arith.addf %2, %4 : vector<8x128xf32>
    %6 = arith.mulf %5, %5 : vector<8x128xf32>
    %cst_5 = arith.constant 0.0356774069 : f32
    %7 = vector.broadcast %cst_5 : f32 to vector<8x128xf32>
    %8 = arith.mulf %7, %6 : vector<8x128xf32>
    %cst_6 = arith.constant 0.797884583 : f32
    %9 = vector.broadcast %cst_6 : f32 to vector<8x128xf32>
    %10 = arith.addf %9, %8 : vector<8x128xf32>
    %11 = arith.mulf %5, %10 : vector<8x128xf32>
    %cst_7 = arith.constant 5.000000e-01 : f32
    %12 = vector.broadcast %cst_7 : f32 to vector<8x128xf32>
    %13 = arith.mulf %12, %5 : vector<8x128xf32>
    %14 = math.tanh %11 : vector<8x128xf32>
    %cst_8 = arith.constant 1.000000e+00 : f32
    %15 = vector.broadcast %cst_8 : f32 to vector<8x128xf32>
    %16 = arith.addf %15, %14 : vector<8x128xf32>
    %17 = arith.mulf %13, %16 : vector<8x128xf32>
    %c0_9 = arith.constant 0 : index
    %c0_10 = arith.constant 0 : index
    %18 = vector.load %arg4[%c0_9, %c0_10] : memref<128x32xf32, #tpu.memory_space<vmem>>, vector<128x32xf32>
    %cst_11 = arith.constant dense<0.000000e+00> : vector<8x32xf32>
    %19 = tpu.matmul %17, %18, %cst_11 {dimension_numbers = #tpu.dot_dimension_numbers<[1], [0], [0], [1], [0, 0, 1, 1], [], []>} : vector<8x128xf32>, vector<128x32xf32>, vector<8x32xf32> -> vector<8x32xf32>
    %c0_12 = arith.constant 0 : index
    %c0_13 = arith.constant 0 : index
    %20 = vector.load %arg5[%c0_12, %c0_13] : memref<1x32xf32, #tpu.memory_space<vmem>>, vector<1x32xf32>
    %21 = vector.broadcast %20 : vector<1x32xf32> to vector<8x32xf32>
    %22 = arith.addf %19, %21 : vector<8x32xf32>
    %c0_14 = arith.constant 0 : index
    %c0_15 = arith.constant 0 : index
    %23 = vector.load %arg6[%c0_14, %c0_15] : memref<8x32xf32, #tpu.memory_space<vmem>>, vector<8x32xf32>
    tpu.vector_store %arg6[%c0_14, %c0_15], %22 {strides = array<i32>} : memref<8x32xf32, #tpu.memory_space<vmem>>, vector<8x32xf32>,
    return
  }
  func.func @transform_0(%arg0: i32) -> (i32, i32) {
    %c0_i32 = arith.constant 0 : i32
    %c0_i32_0 = arith.constant 0 : i32
    return %arg0, %c0_i32 : i32, i32
  }
  func.func @transform_1(%arg0: i32) -> (i32, i32) {
    %c0_i32 = arith.constant 0 : i32
    %c0_i32_0 = arith.constant 0 : i32
    %c0_i32_1 = arith.constant 0 : i32
    return %c0_i32, %c0_i32_0 : i32, i32
  }
  func.func @transform_2(%arg0: i32) -> (i32, i32) {
    %c0_i32 = arith.constant 0 : i32
    %c0_i32_0 = arith.constant 0 : i32
    %c0_i32_1 = arith.constant 0 : i32
    return %c0_i32, %c0_i32_0 : i32, i32
  }
  func.func @transform_3(%arg0: i32) -> (i32, i32) {
    %c0_i32 = arith.constant 0 : i32
    %c0_i32_0 = arith.constant 0 : i32
    %c0_i32_1 = arith.constant 0 : i32
    return %c0_i32, %c0_i32_0 : i32, i32
  }
  func.func @transform_4(%arg0: i32) -> (i32, i32) {
    %c0_i32 = arith.constant 0 : i32
    %c0_i32_0 = arith.constant 0 : i32
    %c0_i32_1 = arith.constant 0 : i32
    return %c0_i32, %c0_i32_0 : i32, i32
  }
  func.func @transform_5(%arg0: i32) -> (i32, i32) {
    %c0_i32 = arith.constant 0 : i32
    %c0_i32_0 = arith.constant 0 : i32
    return %arg0, %c0_i32 : i32, i32
  }
}

</mosaic_0001>

<llo_original>
// kernel: tpu_custom_call.1
$region0: #{tpu_custom_call.1}
  #allocation0 [shape = 'u32[]', space=smem, size = 0x4, offset = 0x4, fixed_abs, tag = 'smem constant byte address 0x4 - core index']
  #allocation1 [shape = 'u32[144,128]{1,0:T(1,128)}', space=vmem, size = 0x12000, scoped, tag = 'internal scratch']
  %s0 = inlined_call_operand.vmem [shape: f32[16,32], index: 0, kind: input, shape index: {}]
  %s1 = inlined_call_operand.vmem [shape: f32[32,128], index: 1, kind: input, shape index: {}]
  %s2 = inlined_call_operand.vmem [shape: f32[1,128], index: 2, kind: input, shape index: {}]
  %s3 = inlined_call_operand.vmem [shape: f32[128,32], index: 3, kind: input, shape index: {}]
  %s4 = inlined_call_operand.vmem [shape: f32[1,32], index: 4, kind: input, shape index: {}]
  %s5 = inlined_call_operand.hbm [shape: f32[16,32], index: 5, kind: output, shape index: {}]
  %s6 = sld [smem:[#allocation0]]
  $region53: #{tpu_custom_call.1} parent=0
    _
  %s8 = ssub.s32 1, %s6
  %s9 = scalar_select 0, %s8, %s6
  $region1: #{tpu_custom_call.1} parent=0
    #allocation2 [shape = 'u8[8192]{0}', space=vmem, size = 0x2000, scoped, tag = 'output window, operand 0']
    #allocation3 [shape = 's32[2]{0}', space=sflag, size = 0x8, scoped, tag = 'scoped memory for tpu_custom_call.1']
    %10 = vsyncpa [#allocation3], 0
    %s11 = scalar_lea.sflag [#allocation3], 1
    %12 = vsyncpa %s11, 0
    loop: start=0, step=1, limit=4
    $region2: #{tpu_custom_call.1} parent=1 // loop_pre_header
      _
    $region3: #{tpu_custom_call.1} parent=1 // loop_header
      %s14 = sphi 0, %s18
      %p15 = scmp.ge.s32.totalorder %s14, 4
      %s24 = sphi 0, %s26
      %s27 = sphi 0, %s24
      %s28 = sphi 0, %s27
      %s44 = sphi 0, %s28
      %s48 = sphi 0, %s48
      %s50 = sphi 0, %s48
      %s51 = sphi 0, %s50
      %s65 = sphi 0, %s51
      %s69 = sphi 0, %s69
      %s71 = sphi 0, %s69
      %s72 = sphi 0, %s71
      %s86 = sphi 0, %s72
      %s90 = sphi 0, %s90
      %s92 = sphi 0, %s90
      %s93 = sphi 0, %s92
      %s107 = sphi 0, %s93
      %s111 = sphi 0, %s111
      %s113 = sphi 0, %s111
      %s114 = sphi 0, %s113
      %s128 = sphi 0, %s114
      %s134 = sphi 0, %s136
      %s137 = sphi 0, %s134
      %s138 = sphi 0, %s137
      %s154 = sphi 0, %s138
    $region4: #{tpu_custom_call.1} parent=1 // loop_header_branch
      %17 = sbr.rel (%p15) target = $region8
    $region5: #{tpu_custom_call.1} parent=1 // loop_body
      %s19 = ssub.s32 %s14, 1
      %s20 = ssub.s32 %s14, 2
      %s21 = sadd.s32 %s14, 1
      %s22 = ssub.s32 %s14, %s21
      %p23 = scmp.eq.s32.totalorder %s22, 0
      %s25 = sadd.s32 %s24, 1
      %s26 = scalar_select %p23, %s24, %s25
      %p29 = pneg %p23
      %p30 = scmp.eq.s32.totalorder %s14, 1
      %p31 = por %p29, %p30
      %p32 = scmp.ne.s32.totalorder %s24, %s27
      %p33 = scmp.eq.s32.totalorder %s14, 0
      %p34 = por %p32, %p33
      %p35 = scmp.ne.s32.totalorder %s24, %s27
      %p36 = scmp.eq.s32.totalorder %s19, 1
      %p37 = por %p35, %p36
      %p38 = scmp.ne.s32.totalorder %s27, %s28
      %p39 = scmp.eq.s32.totalorder %s19, 0
      %p40 = por %p38, %p39
      %p41 = scmp.ne.s32.totalorder %s27, %s28
      %p42 = scmp.eq.s32.totalorder %s20, 1
      %p43 = por %p41, %p42
      %p45 = scmp.ne.s32.totalorder %s28, %s44
      %p46 = scmp.eq.s32.totalorder %s20, 0
      %p47 = por %p45, %p46
      %s49 = sadd.s32 %s48, 1
      %p52 = scmp.eq.s32.totalorder %s14, 1
      %p53 = scmp.ne.s32.totalorder %s48, %s50
      %p54 = scmp.eq.s32.totalorder %s14, 0
      %p55 = por %p53, %p54
      %p56 = scmp.ne.s32.totalorder %s48, %s50
      %p57 = scmp.eq.s32.totalorder %s19, 1
      %p58 = por %p56, %p57
      %p59 = scmp.ne.s32.totalorder %s50, %s51
      %p60 = scmp.eq.s32.totalorder %s19, 0
      %p61 = por %p59, %p60
      %p62 = scmp.ne.s32.totalorder %s50, %s51
      %p63 = scmp.eq.s32.totalorder %s20, 1
      %p64 = por %p62, %p63
      %p66 = scmp.ne.s32.totalorder %s51, %s65
      %p67 = scmp.eq.s32.totalorder %s20, 0
      %p68 = por %p66, %p67
      %s70 = sadd.s32 %s69, 1
      %p73 = scmp.eq.s32.totalorder %s14, 1
      %p74 = scmp.ne.s32.totalorder %s69, %s71
      %p75 = scmp.eq.s32.totalorder %s14, 0
      %p76 = por %p74, %p75
      %p77 = scmp.ne.s32.totalorder %s69, %s71
      %p78 = scmp.eq.s32.totalorder %s19, 1
      %p79 = por %p77, %p78
      %p80 = scmp.ne.s32.totalorder %s71, %s72
      %p81 = scmp.eq.s32.totalorder %s19, 0
      %p82 = por %p80, %p81
      %p83 = scmp.ne.s32.totalorder %s71, %s72
      %p84 = scmp.eq.s32.totalorder %s20, 1
      %p85 = por %p83, %p84
      %p87 = scmp.ne.s32.totalorder %s72, %s86
      %p88 = scmp.eq.s32.totalorder %s20, 0
      %p89 = por %p87, %p88
      %s91 = sadd.s32 %s90, 1
      %p94 = scmp.eq.s32.totalorder %s14, 1
      %p95 = scmp.ne.s32.totalorder %s90, %s92
      %p96 = scmp.eq.s32.totalorder %s14, 0
      %p97 = por %p95, %p96
      %p98 = scmp.ne.s32.totalorder %s90, %s92
      %p99 = scmp.eq.s32.totalorder %s19, 1
      %p100 = por %p98, %p99
      %p101 = scmp.ne.s32.totalorder %s92, %s93
      %p102 = scmp.eq.s32.totalorder %s19, 0
      %p103 = por %p101, %p102
      %p104 = scmp.ne.s32.totalorder %s92, %s93
      %p105 = scmp.eq.s32.totalorder %s20, 1
      %p106 = por %p104, %p105
      %p108 = scmp.ne.s32.totalorder %s93, %s107
      %p109 = scmp.eq.s32.totalorder %s20, 0
      %p110 = por %p108, %p109
      %s112 = sadd.s32 %s111, 1
      %p115 = scmp.eq.s32.totalorder %s14, 1
      %p116 = scmp.ne.s32.totalorder %s111, %s113
      %p117 = scmp.eq.s32.totalorder %s14, 0
      %p118 = por %p116, %p117
      %p119 = scmp.ne.s32.totalorder %s111, %s113
      %p120 = scmp.eq.s32.totalorder %s19, 1
      %p121 = por %p119, %p120
      %p122 = scmp.ne.s32.totalorder %s113, %s114
      %p123 = scmp.eq.s32.totalorder %s19, 0
      %p124 = por %p122, %p123
      %p125 = scmp.ne.s32.totalorder %s113, %s114
      %p126 = scmp.eq.s32.totalorder %s20, 1
      %p127 = por %p125, %p126
      %p129 = scmp.ne.s32.totalorder %s114, %s128
      %p130 = scmp.eq.s32.totalorder %s20, 0
      %p131 = por %p129, %p130
      %s132 = ssub.s32 %s14, %s21
      %p133 = scmp.eq.s32.totalorder %s132, 0
      %s135 = sadd.s32 %s134, 1
      %s136 = scalar_select %p133, %s134, %s135
      %p139 = pneg %p133
      %p140 = scmp.eq.s32.totalorder %s14, 1
      %p141 = por %p139, %p140
      %p142 = scmp.ne.s32.totalorder %s134, %s137
      %p143 = scmp.eq.s32.totalorder %s14, 0
      %p144 = por %p142, %p143
      %p145 = scmp.ne.s32.totalorder %s134, %s137
      %p146 = scmp.eq.s32.totalorder %s19, 1
      %p147 = por %p145, %p146
      %p148 = scmp.ne.s32.totalorder %s137, %s138
      %p149 = scmp.eq.s32.totalorder %s19, 0
      %p150 = por %p148, %p149
      %p151 = scmp.ne.s32.totalorder %s137, %s138
      %p152 = scmp.eq.s32.totalorder %s20, 1
      %p153 = por %p151, %p152
      %p155 = scmp.ne.s32.totalorder %s138, %s154
      %p156 = scmp.eq.s32.totalorder %s20, 0
      %p157 = por %p155, %p156
      %p158 = scmp.le.s32.totalorder 1, %s14
      %p159 = scmp.lt.s32.totalorder %s14, 3
      %p160 = pnand %p158, %p159
      %p161 = pneg %p160
      // Predicated region
      $region9: #{tpu_custom_call.1} parent=5 // pred_check
        _
      $region10: #{tpu_custom_call.1} parent=5 // pred_check_branch
        %163 = sbr.rel (%p160) target = $region12
      $region11: #{tpu_custom_call.1} parent=5 // pred_region
        %s164 = ssub.s32 %s14, 1
        // Predicated region
        $region13: #{tpu_custom_call.1} parent=11 // pred_check
          %p165 = pneg %p61
        $region14: #{tpu_custom_call.1} parent=11 // pred_check_branch
          %167 = sbr.rel (%p165) target = $region16
        $region15: #{tpu_custom_call.1} parent=11 // pred_region
          _
        $region16: #{tpu_custom_call.1} parent=11 // pred_fallthru
          _
        // Predicated region
        $region17: #{tpu_custom_call.1} parent=11 // pred_check
          %p168 = pneg %p82
        $region18: #{tpu_custom_call.1} parent=11 // pred_check_branch
          %170 = sbr.rel (%p168) target = $region20
        $region19: #{tpu_custom_call.1} parent=11 // pred_region
          _
        $region20: #{tpu_custom_call.1} parent=11 // pred_fallthru
          _
        // Predicated region
        $region21: #{tpu_custom_call.1} parent=11 // pred_check
          %p171 = pneg %p103
        $region22: #{tpu_custom_call.1} parent=11 // pred_check_branch
          %173 = sbr.rel (%p171) target = $region24
        $region23: #{tpu_custom_call.1} parent=11 // pred_region
          _
        $region24: #{tpu_custom_call.1} parent=11 // pred_fallthru
          _
        // Predicated region
        $region25: #{tpu_custom_call.1} parent=11 // pred_check
          %p174 = pneg %p124
        $region26: #{tpu_custom_call.1} parent=11 // pred_check_branch
          %176 = sbr.rel (%p174) target = $region28
        $region27: #{tpu_custom_call.1} parent=11 // pred_region
          _
        $region28: #{tpu_custom_call.1} parent=11 // pred_fallthru
          _
      $region12: #{tpu_custom_call.1} parent=5 // pred_fallthru
        _
      %p177 = scmp.lt.s32.totalorder %s14, 2
      // Predicated region
      $region29: #{tpu_custom_call.1} parent=5 // pred_check
        %p178 = pneg %p177
      $region30: #{tpu_custom_call.1} parent=5 // pred_check_branch
        %180 = sbr.rel (%p178) target = $region32
      $region31: #{tpu_custom_call.1} parent=5 // pred_region
        // Predicated region
        $region33: #{tpu_custom_call.1} parent=31 // pred_check
          %p181 = pneg %p34
        $region34: #{tpu_custom_call.1} parent=31 // pred_check_branch
          %183 = sbr.rel (%p181) target = $region36
        $region35: #{tpu_custom_call.1} parent=31 // pred_region
          %p184 = scmp.lt.s32.totalorder %s14, 1
          %s185 = scalar_select %p184, %s14, 1
          %s186 = smul.addr %s185, 8
          %s187 = scalar_lea.vmem %s0, %s186
        $region36: #{tpu_custom_call.1} parent=31 // pred_fallthru
          _
      $region32: #{tpu_custom_call.1} parent=5 // pred_fallthru
        _
      %p188 = scmp.le.s32.totalorder 1, %s14
      %p189 = scmp.lt.s32.totalorder %s14, 3
      %p190 = pnand %p188, %p189
      %p191 = pneg %p190
      // Predicated region
      $region37: #{tpu_custom_call.1} parent=5 // pred_check
        _
      $region38: #{tpu_custom_call.1} parent=5 // pred_check_branch
        %193 = sbr.rel (%p190) target = $region40
      $region39: #{tpu_custom_call.1} parent=5 // pred_region
        %s194 = ssub.s32 %s14, 1
        %p195 = scmp.lt.s32.totalorder %s19, 1
        %s196 = scalar_select %p195, %s19, 1
        %s197 = smul.addr %s196, 8
        %s198 = scalar_lea.vmem %s0, %s197
        %p199 = pneg %p40
        %p200 = pneg %p37
        %p201 = pneg %p61
        %p202 = pneg %p58
        %p203 = pneg %p82
        %p204 = pneg %p79
        %p205 = pneg %p103
        %p206 = pneg %p100
        %p207 = pneg %p124
        %p208 = pneg %p121
        %p209 = pneg %p150
        %p210 = pneg %p147
        %s211 = sand.u32 %s137, 1
        %s212 = scalar_lea.sflag [#allocation3], %s211
        %s213 = sand.u32 %s137, 1
        %s214 = smul.addr %s213, 8
        %s215 = scalar_lea.vmem [#allocation2], %s214
        %p216 = scmp.lt.s32.totalorder %s19, 1
        %s217 = scalar_select %p216, %s19, 1
        %s218 = smul.addr %s217, 8
        %s219 = scalar_lea.vmem %s0, %s218
        %v220 = vld [vmem:[%s219] sm:$0xff]
        %v221 = vld [vmem:[%s1] sm:$0xff]
        %v222 = vld [vmem:[%s1 + $0x8] sm:$0xff]
        %v223 = vld [vmem:[%s1 + $0x10] sm:$0xff]
        %v224 = vld [vmem:[%s1 + $0x18] sm:$0xff]
        %v225 = vld [vmem:[%s2] sm:$0x1]
        %v227 = vlaneseq
        %v228 = vshrl.u32 %v227, 7
        %v229 = vsub.s32 0, %v228
        %v230 = vrot.slane %v225, %v229
        %vm232 = vcmask 261120
        %v234 = vsel %vm232, %v220, 0
        %236 = vmatprep.subr.mxu0 0.0
        %237 = vmatpush1.msra.mxu0 %v221
        %238 = vmatprep.subr.mxu0 0.0
        %239 = vmatpush1.msra.mxu0 %v222
        %240 = vmatprep.subr.mxu0 0.0
        %241 = vmatpush1.msra.mxu0 %v223
        %242 = vmatprep.subr.mxu0 0.0
        %243 = vmatpush1.msra.mxu0 %v224
        %244 = vmatprep.subr.mxu0 0.0
        %245 = vmatpush1.msra.mxu0 0.0
        %246 = vmatprep.subr.mxu0 0.0
        %247 = vmatpush1.msra.mxu0 0.0
        %248 = vmatprep.subr.mxu0 0.0
        %249 = vmatpush1.msra.mxu0 0.0
        %250 = vmatprep.subr.mxu0 0.0
        %251 = vmatpush1.msra.mxu0 0.0
        %252 = vmatprep.subr.mxu0 0.0
        %253 = vmatpush1.msra.mxu0 0.0
        %254 = vmatprep.subr.mxu0 0.0
        %255 = vmatpush1.msra.mxu0 0.0
        %256 = vmatprep.subr.mxu0 0.0
        %257 = vmatpush1.msra.mxu0 0.0
        %258 = vmatprep.subr.mxu0 0.0
        %259 = vmatpush1.msra.mxu0 0.0
        %260 = vmatprep.subr.mxu0 0.0
        %261 = vmatpush1.msra.mxu0 0.0
        %262 = vmatprep.subr.mxu0 0.0
        %263 = vmatpush1.msra.mxu0 0.0
        %264 = vmatprep.subr.mxu0 0.0
        %265 = vmatpush1.msra.mxu0 0.0
        %266 = vmatprep.subr.mxu0 0.0
        %267 = vmatpush1.msra.mxu0 0.0
        %268 = vmatprep.subr.mxu0 0.0
        %269 = vmatpush1.msra.mxu0 0.0
        %270 = vmatprep.subr.mxu0 0.0
        %271 = vmatpush1.msra.mxu0 0.0
        %272 = vmatprep.subr.mxu0 0.0
        %273 = vmatpush1.msra.mxu0 0.0
        %274 = vmatprep.subr.mxu0 0.0
        %275 = vmatpush1.msra.mxu0 0.0
        %276 = vmatprep.subr.mxu0 0.0
        %277 = vmatpush1.msra.mxu0 0.0
        %278 = vmatprep.subr.mxu0 0.0
        %279 = vmatpush1.msra.mxu0 0.0
        %280 = vmatprep.subr.mxu0 0.0
        %281 = vmatpush1.msra.mxu0 0.0
        %282 = vmatprep.subr.mxu0 0.0
        %283 = vmatpush1.msra.mxu0 0.0
        %284 = vmatprep.subr.mxu0 0.0
        %285 = vmatpush1.msra.mxu0 0.0
        %286 = vmatprep.subr.mxu0 0.0
        %287 = vmatpush1.msra.mxu0 0.0
        %288 = vmatprep.subr.mxu0 0.0
        %289 = vmatpush1.msra.mxu0 0.0
        %290 = vmatprep.subr.mxu0 0.0
        %291 = vmatpush1.msra.mxu0 0.0
        %292 = vmatprep.subr.mxu0 0.0
        %293 = vmatpush1.msra.mxu0 0.0
        %294 = vmatprep.subr.mxu0 0.0
        %295 = vmatpush1.msra.mxu0 0.0
        %296 = vmatprep.subr.mxu0 0.0
        %297 = vmatpush1.msra.mxu0 0.0
        %298 = vmatprep.subr.mxu0 0.0
        %299 = vmatpush1.msra.mxu0 0.0
        %300 = vmatprep.mubr.f32.mxu0 0.0
        %301 = vmatmul.mubr.f32.gmra.mrb[0].mxu0 %v234
        %v302 = vpop.f32.mrb[0].mxu0
        %v303 = vadd.f32 %v230, %v302
        %v304 = vpop.f32.mrb[0].mxu0
        %305 = vdwg.mxu0
        %v306 = vmul.f32 %v303, %v303
        %v307 = vmul.f32 %v306, 0.035677407
        %v308 = vadd.f32 %v307, 0.7978846
        %v309 = vmul.f32 %v303, %v308
        %v310 = vmul.f32 %v303, 0.5
        %v311 = vtanh.pop %v309
        %v312 = vadd.f32 %v311, 1.0
        %v313 = vmul.f32 %v310, %v312
        %v314 = vld [vmem:[%s3] sm:$0xff]
        %v315 = vld [vmem:[%s3 + $0x8] sm:$0xff]
        %v316 = vld [vmem:[%s3 + $0x10] sm:$0xff]
        %v317 = vld [vmem:[%s3 + $0x18] sm:$0xff]
        %v318 = vld [vmem:[%s3 + $0x20] sm:$0xff]
        %v319 = vld [vmem:[%s3 + $0x28] sm:$0xff]
        %v320 = vld [vmem:[%s3 + $0x30] sm:$0xff]
        %v321 = vld [vmem:[%s3 + $0x38] sm:$0xff]
        %v322 = vld [vmem:[%s3 + $0x40] sm:$0xff]
        %v323 = vld [vmem:[%s3 + $0x48] sm:$0xff]
        %v324 = vld [vmem:[%s3 + $0x50] sm:$0xff]
        %v325 = vld [vmem:[%s3 + $0x58] sm:$0xff]
        %v326 = vld [vmem:[%s3 + $0x60] sm:$0xff]
        %v327 = vld [vmem:[%s3 + $0x68] sm:$0xff]
        %v328 = vld [vmem:[%s3 + $0x70] sm:$0xff]
        %v329 = vld [vmem:[%s3 + $0x78] sm:$0xff]
        %v330 = vld [vmem:[%s4] sm:$0x1]
        %v332 = vlaneseq
        %v333 = vshrl.u32 %v332, 7
        %v334 = vsub.s32 0, %v333
        %v335 = vrot.slane %v330, %v334
        %337 = vmatprep.subr.mxu0 0.0
        %338 = vmatpush1.msra.mxu0 %v314
        %339 = vmatprep.subr.mxu0 0.0
        %340 = vmatpush1.msra.mxu0 %v315
        %341 = vmatprep.subr.mxu0 0.0
        %342 = vmatpush1.msra.mxu0 %v316
        %343 = vmatprep.subr.mxu0 0.0
        %344 = vmatpush1.msra.mxu0 %v317
        %345 = vmatprep.subr.mxu0 0.0
        %346 = vmatpush1.msra.mxu0 %v318
        %347 = vmatprep.subr.mxu0 0.0
        %348 = vmatpush1.msra.mxu0 %v319
        %349 = vmatprep.subr.mxu0 0.0
        %350 = vmatpush1.msra.mxu0 %v320
        %351 = vmatprep.subr.mxu0 0.0
        %352 = vmatpush1.msra.mxu0 %v321
        %353 = vmatprep.subr.mxu0 0.0
        %354 = vmatpush1.msra.mxu0 %v322
        %355 = vmatprep.subr.mxu0 0.0
        %356 = vmatpush1.msra.mxu0 %v323
        %357 = vmatprep.subr.mxu0 0.0
        %358 = vmatpush1.msra.mxu0 %v324
        %359 = vmatprep.subr.mxu0 0.0
        %360 = vmatpush1.msra.mxu0 %v325
        %361 = vmatprep.subr.mxu0 0.0
        %362 = vmatpush1.msra.mxu0 %v326
        %363 = vmatprep.subr.mxu0 0.0
        %364 = vmatpush1.msra.mxu0 %v327
        %365 = vmatprep.subr.mxu0 0.0
        %366 = vmatpush1.msra.mxu0 %v328
        %367 = vmatprep.subr.mxu0 0.0
        %368 = vmatpush1.msra.mxu0 %v329
        %369 = vmatprep.subr.mxu0 0.0
        %370 = vmatpush1.msra.mxu0 0.0
        %371 = vmatprep.subr.mxu0 0.0
        %372 = vmatpush1.msra.mxu0 0.0
        %373 = vmatprep.subr.mxu0 0.0
        %374 = vmatpush1.msra.mxu0 0.0
        %375 = vmatprep.subr.mxu0 0.0
        %376 = vmatpush1.msra.mxu0 0.0
        %377 = vmatprep.subr.mxu0 0.0
        %378 = vmatpush1.msra.mxu0 0.0
        %379 = vmatprep.subr.mxu0 0.0
        %380 = vmatpush1.msra.mxu0 0.0
        %381 = vmatprep.subr.mxu0 0.0
        %382 = vmatpush1.msra.mxu0 0.0
        %383 = vmatprep.subr.mxu0 0.0
        %384 = vmatpush1.msra.mxu0 0.0
        %385 = vmatprep.subr.mxu0 0.0
        %386 = vmatpush1.msra.mxu0 0.0
        %387 = vmatprep.subr.mxu0 0.0
        %388 = vmatpush1.msra.mxu0 0.0
        %389 = vmatprep.subr.mxu0 0.0
        %390 = vmatpush1.msra.mxu0 0.0
        %391 = vmatprep.subr.mxu0 0.0
        %392 = vmatpush1.msra.mxu0 0.0
        %393 = vmatprep.subr.mxu0 0.0
        %394 = vmatpush1.msra.mxu0 0.0
        %395 = vmatprep.subr.mxu0 0.0
        %396 = vmatpush1.msra.mxu0 0.0
        %397 = vmatprep.subr.mxu0 0.0
        %398 = vmatpush1.msra.mxu0 0.0
        %399 = vmatprep.subr.mxu0 0.0
        %400 = vmatpush1.msra.mxu0 0.0
        %401 = vmatprep.mubr.f32.mxu0 0.0
        %402 = vmatmul.mubr.f32.gmra.mrb[0].mxu0 %v313
        %v403 = vpop.f32.mrb[0].mxu0
        %v404 = vadd.f32 %v335, %v403
        %v405 = vpop.f32.mrb[0].mxu0
        %406 = vdwg.mxu0
        %407 = vst.msk [vmem:[%s215] sm:$0xff] %vm232, %v404
        %s408 = sand.u32 %s137, 1
        %s409 = scalar_lea.sflag [#allocation3], %s408
        %s410 = sand.u32 %s137, 1
        %s411 = smul.addr %s410, 8
        %s412 = scalar_lea.vmem [#allocation2], %s411
        // Predicated region
        $region41: #{tpu_custom_call.1} parent=39 // pred_check
          %p413 = pneg %p147
        $region42: #{tpu_custom_call.1} parent=39 // pred_check_branch
          %415 = sbr.rel (%p413) target = $region44
        $region43: #{tpu_custom_call.1} parent=39 // pred_region
          %s417 = ssub.s32 128, 128
          %418 = vsyncadd %s409, %s417
          %s419 = smul.addr %s19, 128
          %s420 = scalar_lea.hbm %s5, %s419
          %s422 = sshll.u32 %s412, 4
          %s423 = int_to_ptr.vmem [resolvable:$true] %s422
          %425 = dma.vmem_to_hbm [thread:$0]  %s423, 128, %s420, %s409
        $region44: #{tpu_custom_call.1} parent=39 // pred_fallthru
          _
      $region40: #{tpu_custom_call.1} parent=5 // pred_fallthru
        _
      %p426 = scmp.le.s32.totalorder 2, %s14
      // Predicated region
      $region45: #{tpu_custom_call.1} parent=5 // pred_check
        %p427 = pneg %p426
      $region46: #{tpu_custom_call.1} parent=5 // pred_check_branch
        %429 = sbr.rel (%p427) target = $region48
      $region47: #{tpu_custom_call.1} parent=5 // pred_region
        %s430 = ssub.s32 %s14, 2
        // Predicated region
        $region49: #{tpu_custom_call.1} parent=47 // pred_check
          %p431 = pneg %p153
        $region50: #{tpu_custom_call.1} parent=47 // pred_check_branch
          %433 = sbr.rel (%p431) target = $region52
        $region51: #{tpu_custom_call.1} parent=47 // pred_region
          %s434 = sand.u32 %s138, 1
          %s435 = scalar_lea.sflag [#allocation3], %s434
          %s436 = sand.u32 %s138, 1
          %s437 = smul.addr %s436, 8
          %s438 = scalar_lea.vmem [#allocation2], %s437
          %439 = dma.done %s435, 128
        $region52: #{tpu_custom_call.1} parent=47 // pred_fallthru
          _
      $region48: #{tpu_custom_call.1} parent=5 // pred_fallthru
        _
    $region6: #{tpu_custom_call.1} parent=1 // loop_footer
      %s18 = sadd.s32 1, %s14
    $region7: #{tpu_custom_call.1} parent=1 // loop_footer_branch
      %13 = sbr.rel target = $region3
    $region8: #{tpu_custom_call.1} parent=1 // loop_exit
      _
    %440 = vsyncpa [#allocation3], 1
    %s441 = scalar_lea.sflag [#allocation3], 1
    %442 = vsyncpa %s441, 1

</llo_original>
